<compile_context>
chip_gen: v6e
topology: v6e:2x2x1
jax: 0.10.0
libtpu: 0.0.40
codegen_flags: <defaults>
</compile_context>

<pallas_src>
import jax
import jax.numpy as jnp
from jax.experimental import pallas as pl
from jax.experimental.pallas import tpu as pltpu


def _mlp_kernel(xT_ref, w1_ref, b1_ref, w2_ref, b2_ref, w3_ref, b3_ref, oT_ref):
    # xT_ref: [IN, TB]   (batch on the 128-lane axis)
    # wK_ref: [outK, inK]  (PyTorch-native layout)   bK_ref: [outK, 1]
    xT = xT_ref[...]
    h1 = jnp.dot(w1_ref[...], xT, preferred_element_type=jnp.float32) + b1_ref[...]
    h1 = jnp.maximum(h1, 0.0)                       # ReLU  (Dropout(p=0) == identity)
    h2 = jnp.dot(w2_ref[...], h1, preferred_element_type=jnp.float32) + b2_ref[...]
    h2 = jnp.maximum(h2, 0.0)                       # ReLU
    y = jnp.dot(w3_ref[...], h2, preferred_element_type=jnp.float32) + b3_ref[...]
    oT_ref[...] = y.astype(oT_ref.dtype)


def dummy_model2_forward(x, params, tile_b=4096):
    """x: [B, input_dim] float32 (PyTorch layout).  params: dict (w1,b1,w2,b2,w3,b3),
    weights [out, in], biases [out, 1]."""
    w1, b1, w2, b2, w3, b3 = (params["w1"], params["b1"], params["w2"],
                              params["b2"], params["w3"], params["b3"])
    B, in_dim = x.shape
    out_dim = w3.shape[0]

    # Tile size: large multiple of 128 lanes (amortize per-step pipeline overhead),
    # but never larger than the 128-rounded batch.  Lane-dense layout means even
    # TB=4096 is only ~128 KiB per double-buffered x tile -> fits v7x's 32 MiB scoped VMEM.
    TB = min(tile_b, pl.cdiv(B, 128) * 128)
    B_pad = pl.cdiv(B, TB) * TB

    # Pad batch so every block is full-lane (no masked DMA / masked stores on the tail),
    # then put batch on the lane axis.
    x_pad = jnp.pad(x, ((0, B_pad - B), (0, 0)))
    xT = x_pad.T                                    # [IN, B_pad]

    resident = lambda a: pl.BlockSpec(a.shape, lambda i: (0, 0))

    yT = pl.pallas_call(
        _mlp_kernel,
        out_shape=jax.ShapeDtypeStruct((out_dim, B_pad), jnp.float32),
        grid=(B_pad // TB,),
        in_specs=[
            pl.BlockSpec((in_dim, TB), lambda i: (0, i)),   # x^T tile (pipelined)
            resident(w1), resident(b1),
            resident(w2), resident(b2),
            resident(w3), resident(b3),
        ],
        out_specs=pl.BlockSpec((out_dim, TB), lambda i: (0, i)),
        compiler_params=pltpu.CompilerParams(
            dimension_semantics=("parallel",),              # v7x: shard batch over 2 TCs
        ),
    )(xT, w1, b1, w2, b2, w3, b3)

    return yT[:, :B].T                              # back to [B, out_dim]


def init_params(key, input_dim=6, output_dim=3, hidden_dim_1=16, hidden_dim_2=16):
    """Deterministic init mimicking nn.Linear's uniform(-1/sqrt(fan_in), 1/sqrt(fan_in)).
    Weights stored in PyTorch-native [out, in] layout; biases as [out, 1] columns."""
    ks = jax.random.split(key, 6)

    def linear(kw, kb, fan_in, fan_out):
        bound = 1.0 / jnp.sqrt(fan_in)
        w = jax.random.uniform(kw, (fan_out, fan_in), jnp.float32, -bound, bound)
        b = jax.random.uniform(kb, (fan_out, 1), jnp.float32, -bound, bound)
        return w, b

    w1, b1 = linear(ks[0], ks[1], input_dim, hidden_dim_1)
    w2, b2 = linear(ks[2], ks[3], hidden_dim_1, hidden_dim_2)
    w3, b3 = linear(ks[4], ks[5], hidden_dim_2, output_dim)
    return dict(w1=w1, b1=b1, w2=w2, b2=b2, w3=w3, b3=b3)


def _reference_forward(x, p):
    h1 = jnp.maximum(x @ p["w1"].T + p["b1"][:, 0], 0.0)
    h2 = jnp.maximum(h1 @ p["w2"].T + p["b2"][:, 0], 0.0)
    return h2 @ p["w3"].T + p["b3"][:, 0]


if __name__ == "__main__":
    key = jax.random.PRNGKey(0)
    k_x, k_p = jax.random.split(key)

    B, IN, OUT = 8, 6, 3
    x = jax.random.normal(k_x, (B, IN), jnp.float32)
    params = init_params(k_p, input_dim=IN, output_dim=OUT)

    out = dummy_model2_forward(x, params)
    out = jax.block_until_ready(out)

    ref = _reference_forward(x, params)
    assert out.shape == (B, OUT)
    assert jnp.allclose(out, ref, atol=1e-5, rtol=1e-5)

    print("KERNEL_OK")
</pallas_src>

<mosaic_0001>
module attributes {stable_mosaic.version = 11 : i64} {
  func.func @_mlp_kernel(%arg0: i32, %arg1: memref<6x128xf32, #tpu.memory_space<vmem>>, %arg2: memref<16x6xf32, #tpu.memory_space<vmem>>, %arg3: memref<16x1xf32, #tpu.memory_space<vmem>>, %arg4: memref<16x16xf32, #tpu.memory_space<vmem>>, %arg5: memref<16x1xf32, #tpu.memory_space<vmem>>, %arg6: memref<3x16xf32, #tpu.memory_space<vmem>>, %arg7: memref<3x1xf32, #tpu.memory_space<vmem>>, %arg8: memref<3x128xf32, #tpu.memory_space<vmem>>) attributes {dimension_semantics = [#tpu.dimension_semantics<parallel>], iteration_bounds = array<i64: 1>, scalar_prefetch = 0 : i64, scratch_operands = 0 : i64, tpu.core_type = #tpu.core_type<tc>, window_params = [{transform_indices = @transform_0, window_bounds = array<i64: 6, 128>}, {pipeline_mode = #tpu.pipeline_mode<synchronous>, transform_indices = @transform_1, window_bounds = array<i64: 16, 6>}, {pipeline_mode = #tpu.pipeline_mode<synchronous>, transform_indices = @transform_2, window_bounds = array<i64: 16, 1>}, {pipeline_mode = #tpu.pipeline_mode<synchronous>, transform_indices = @transform_3, window_bounds = array<i64: 16, 16>}, {pipeline_mode = #tpu.pipeline_mode<synchronous>, transform_indices = @transform_4, window_bounds = array<i64: 16, 1>}, {pipeline_mode = #tpu.pipeline_mode<synchronous>, transform_indices = @transform_5, window_bounds = array<i64: 3, 16>}, {pipeline_mode = #tpu.pipeline_mode<synchronous>, transform_indices = @transform_6, window_bounds = array<i64: 3, 1>}, {transform_indices = @transform_7, window_bounds = array<i64: 3, 128>}]} {
    %c0 = arith.constant 0 : index
    %c0_0 = arith.constant 0 : index
    %0 = vector.load %arg1[%c0, %c0_0] : memref<6x128xf32, #tpu.memory_space<vmem>>, vector<6x128xf32>
    %c0_1 = arith.constant 0 : index
    %c0_2 = arith.constant 0 : index
    %1 = vector.load %arg2[%c0_1, %c0_2] : memref<16x6xf32, #tpu.memory_space<vmem>>, vector<16x6xf32>
    %cst = arith.constant dense<0.000000e+00> : vector<16x128xf32>
    %2 = tpu.matmul %1, %0, %cst {dimension_numbers = #tpu.dot_dimension_numbers<[1], [0], [0], [1], [0, 0, 1, 1], [], []>} : vector<16x6xf32>, vector<6x128xf32>, vector<16x128xf32> -> vector<16x128xf32>
    %c0_3 = arith.constant 0 : index
    %c0_4 = arith.constant 0 : index
    %3 = vector.load %arg3[%c0_3, %c0_4] : memref<16x1xf32, #tpu.memory_space<vmem>>, vector<16x1xf32>
    %4 = vector.broadcast %3 : vector<16x1xf32> to vector<16x128xf32>
    %5 = arith.addf %2, %4 : vector<16x128xf32>
    %cst_5 = arith.constant 0.000000e+00 : f32
    %6 = vector.broadcast %cst_5 : f32 to vector<16x128xf32>
    %7 = arith.maximumf %5, %6 : vector<16x128xf32>
    %c0_6 = arith.constant 0 : index
    %c0_7 = arith.constant 0 : index
    %8 = vector.load %arg4[%c0_6, %c0_7] : memref<16x16xf32, #tpu.memory_space<vmem>>, vector<16x16xf32>
    %cst_8 = arith.constant dense<0.000000e+00> : vector<16x128xf32>
    %9 = tpu.matmul %8, %7, %cst_8 {dimension_numbers = #tpu.dot_dimension_numbers<[1], [0], [0], [1], [0, 0, 1, 1], [], []>} : vector<16x16xf32>, vector<16x128xf32>, vector<16x128xf32> -> vector<16x128xf32>
    %c0_9 = arith.constant 0 : index
    %c0_10 = arith.constant 0 : index
    %10 = vector.load %arg5[%c0_9, %c0_10] : memref<16x1xf32, #tpu.memory_space<vmem>>, vector<16x1xf32>
    %11 = vector.broadcast %10 : vector<16x1xf32> to vector<16x128xf32>
    %12 = arith.addf %9, %11 : vector<16x128xf32>
    %cst_11 = arith.constant 0.000000e+00 : f32
    %13 = vector.broadcast %cst_11 : f32 to vector<16x128xf32>
    %14 = arith.maximumf %12, %13 : vector<16x128xf32>
    %c0_12 = arith.constant 0 : index
    %c0_13 = arith.constant 0 : index
    %15 = vector.load %arg6[%c0_12, %c0_13] : memref<3x16xf32, #tpu.memory_space<vmem>>, vector<3x16xf32>
    %cst_14 = arith.constant dense<0.000000e+00> : vector<3x128xf32>
    %16 = tpu.matmul %15, %14, %cst_14 {dimension_numbers = #tpu.dot_dimension_numbers<[1], [0], [0], [1], [0, 0, 1, 1], [], []>} : vector<3x16xf32>, vector<16x128xf32>, vector<3x128xf32> -> vector<3x128xf32>
    %c0_15 = arith.constant 0 : index
    %c0_16 = arith.constant 0 : index
    %17 = vector.load %arg7[%c0_15, %c0_16] : memref<3x1xf32, #tpu.memory_space<vmem>>, vector<3x1xf32>
    %18 = vector.broadcast %17 : vector<3x1xf32> to vector<3x128xf32>
    %19 = arith.addf %16, %18 : vector<3x128xf32>
    %c0_17 = arith.constant 0 : index
    %c0_18 = arith.constant 0 : index
    %20 = vector.load %arg8[%c0_17, %c0_18] : memref<3x128xf32, #tpu.memory_space<vmem>>, vector<3x128xf32>
    tpu.vector_store %arg8[%c0_17, %c0_18], %19 {strides = array<i32>} : memref<3x128xf32, #tpu.memory_space<vmem>>, vector<3x128xf32>,
    return
  }
  func.func @transform_0(%arg0: i32) -> (i32, i32) {
    %c0_i32 = arith.constant 0 : i32
    %c0_i32_0 = arith.constant 0 : i32
    return %c0_i32, %arg0 : i32, i32
  }
  func.func @transform_1(%arg0: i32) -> (i32, i32) {
    %c0_i32 = arith.constant 0 : i32
    %c0_i32_0 = arith.constant 0 : i32
    %c0_i32_1 = arith.constant 0 : i32
    return %c0_i32, %c0_i32_0 : i32, i32
  }
  func.func @transform_2(%arg0: i32) -> (i32, i32) {
    %c0_i32 = arith.constant 0 : i32
    %c0_i32_0 = arith.constant 0 : i32
    %c0_i32_1 = arith.constant 0 : i32
    return %c0_i32, %c0_i32_0 : i32, i32
  }
  func.func @transform_3(%arg0: i32) -> (i32, i32) {
    %c0_i32 = arith.constant 0 : i32
    %c0_i32_0 = arith.constant 0 : i32
    %c0_i32_1 = arith.constant 0 : i32
    return %c0_i32, %c0_i32_0 : i32, i32
  }
  func.func @transform_4(%arg0: i32) -> (i32, i32) {
    %c0_i32 = arith.constant 0 : i32
    %c0_i32_0 = arith.constant 0 : i32
    %c0_i32_1 = arith.constant 0 : i32
    return %c0_i32, %c0_i32_0 : i32, i32
  }
  func.func @transform_5(%arg0: i32) -> (i32, i32) {
    %c0_i32 = arith.constant 0 : i32
    %c0_i32_0 = arith.constant 0 : i32
    %c0_i32_1 = arith.constant 0 : i32
    return %c0_i32, %c0_i32_0 : i32, i32
  }
  func.func @transform_6(%arg0: i32) -> (i32, i32) {
    %c0_i32 = arith.constant 0 : i32
    %c0_i32_0 = arith.constant 0 : i32
    %c0_i32_1 = arith.constant 0 : i32
    return %c0_i32, %c0_i32_0 : i32, i32
  }
  func.func @transform_7(%arg0: i32) -> (i32, i32) {
    %c0_i32 = arith.constant 0 : i32
    %c0_i32_0 = arith.constant 0 : i32
    return %c0_i32, %arg0 : i32, i32
  }
}

</mosaic_0001>

<llo_original>
// kernel: tpu_custom_call.1
$region0: #{tpu_custom_call.1}
  #allocation0 [shape = 'u32[]', space=smem, size = 0x4, offset = 0x4, fixed_abs, tag = 'smem constant byte address 0x4 - core index']
  #allocation1 [shape = 'u32[144,128]{1,0:T(1,128)}', space=vmem, size = 0x12000, scoped, tag = 'internal scratch']
  %s0 = inlined_call_operand.vmem [shape: f32[6,128], index: 0, kind: input, shape index: {}]
  %s1 = inlined_call_operand.vmem [shape: f32[16,6], index: 1, kind: input, shape index: {}]
  %s2 = inlined_call_operand.vmem [shape: f32[16,1], index: 2, kind: input, shape index: {}]
  %s3 = inlined_call_operand.vmem [shape: f32[16,16], index: 3, kind: input, shape index: {}]
  %s4 = inlined_call_operand.vmem [shape: f32[16,1], index: 4, kind: input, shape index: {}]
  %s5 = inlined_call_operand.vmem [shape: f32[3,16], index: 5, kind: input, shape index: {}]
  %s6 = inlined_call_operand.vmem [shape: f32[3,1], index: 6, kind: input, shape index: {}]
  %s7 = inlined_call_operand.hbm [shape: f32[3,128], index: 7, kind: output, shape index: {}]
  %s8 = sld [smem:[#allocation0]]
  $region38: #{tpu_custom_call.1} parent=0
    _
  %s10 = ssub.s32 1, %s8
  %s11 = scalar_select 0, %s10, %s8
  $region1: #{tpu_custom_call.1} parent=0
    #allocation2 [shape = 'u8[2048]{0}', space=vmem, size = 0x800, scoped, tag = 'output window, operand 0, single buffered']
    #allocation3 [shape = 's32[1]{0}', space=sflag, size = 0x4, scoped, tag = 'scoped memory for tpu_custom_call.1']
    %12 = vsyncpa [#allocation3], 0
    // Predicated region
    $region2: #{tpu_custom_call.1} parent=1 // pred_check
      _
    $region3: #{tpu_custom_call.1} parent=1 // pred_check_branch
      %14 = sbr.rel (0) target = $region5
    $region4: #{tpu_custom_call.1} parent=1 // pred_region
      _
    $region5: #{tpu_custom_call.1} parent=1 // pred_fallthru
      _
    // Predicated region
    $region6: #{tpu_custom_call.1} parent=1 // pred_check
      _
    $region7: #{tpu_custom_call.1} parent=1 // pred_check_branch
      %16 = sbr.rel (0) target = $region9
    $region8: #{tpu_custom_call.1} parent=1 // pred_region
      _
    $region9: #{tpu_custom_call.1} parent=1 // pred_fallthru
      _
    // Predicated region
    $region10: #{tpu_custom_call.1} parent=1 // pred_check
      _
    $region11: #{tpu_custom_call.1} parent=1 // pred_check_branch
      %18 = sbr.rel (0) target = $region13
    $region12: #{tpu_custom_call.1} parent=1 // pred_region
      _
    $region13: #{tpu_custom_call.1} parent=1 // pred_fallthru
      _
    // Predicated region
    $region14: #{tpu_custom_call.1} parent=1 // pred_check
      _
    $region15: #{tpu_custom_call.1} parent=1 // pred_check_branch
      %20 = sbr.rel (0) target = $region17
    $region16: #{tpu_custom_call.1} parent=1 // pred_region
      _
    $region17: #{tpu_custom_call.1} parent=1 // pred_fallthru
      _
    // Predicated region
    $region18: #{tpu_custom_call.1} parent=1 // pred_check
      _
    $region19: #{tpu_custom_call.1} parent=1 // pred_check_branch
      %22 = sbr.rel (0) target = $region21
    $region20: #{tpu_custom_call.1} parent=1 // pred_region
      _
    $region21: #{tpu_custom_call.1} parent=1 // pred_fallthru
      _
    // Predicated region
    $region22: #{tpu_custom_call.1} parent=1 // pred_check
      _
    $region23: #{tpu_custom_call.1} parent=1 // pred_check_branch
      %24 = sbr.rel (0) target = $region25
    $region24: #{tpu_custom_call.1} parent=1 // pred_region
      _
    $region25: #{tpu_custom_call.1} parent=1 // pred_fallthru
      _
    // Predicated region
    $region26: #{tpu_custom_call.1} parent=1 // pred_check
      _
    $region27: #{tpu_custom_call.1} parent=1 // pred_check_branch
      %26 = sbr.rel (0) target = $region29
    $region28: #{tpu_custom_call.1} parent=1 // pred_region
      _
    $region29: #{tpu_custom_call.1} parent=1 // pred_fallthru
      _
    %v27 = vld [vmem:[%s0] sm:$0x3f]
    %v28 = vld [vmem:[%s1] sm:$0xff]
    %v29 = vld [vmem:[%s1 + $0x8] sm:$0xff]
    %v30 = vld [vmem:[%s2] sm:$0xff]
    %v31 = vld [vmem:[%s2 + $0x8] sm:$0xff]
    %33 = vset.pattern.permute.xlu0 0
    %34 = vperm.xlu0 %33, %v30
    %v35 = vpop.permute.xlu0 %34
    %38 = vset.pattern.permute.xlu0 0
    %39 = vperm.xlu0 %38, %v31
    %v40 = vpop.permute.xlu0 %39
    %vm42 = vcmask 48128
    %v44 = vsel %vm42, %v28, 0
    %v47 = vsel %vm42, %v29, 0
    %vm49 = vcmask 1045504
    %v51 = vsel %vm49, %v27, 0
    %53 = vmatprep.subr.mxu0 0.0
    %54 = vmatpush1.msra.mxu0 0.0
    %55 = vmatprep.subr.mxu0 0.0
    %56 = vmatpush1.msra.mxu0 0.0
    %57 = vmatprep.subr.mxu0 0.0
    %58 = vmatpush1.msra.mxu0 0.0
    %59 = vmatprep.subr.mxu0 0.0
    %60 = vmatpush1.msra.mxu0 0.0
    %61 = vmatprep.subr.mxu0 0.0
    %62 = vmatpush1.msra.mxu0 0.0
    %63 = vmatprep.subr.mxu0 0.0
    %64 = vmatpush1.msra.mxu0 0.0
    %65 = vmatprep.subr.mxu0 0.0
    %66 = vmatpush1.msra.mxu0 0.0
    %67 = vmatprep.subr.mxu0 0.0
    %68 = vmatpush1.msra.mxu0 0.0
    %69 = vmatprep.subr.mxu0 0.0
    %70 = vmatpush1.msra.mxu0 0.0
    %71 = vmatprep.subr.mxu0 0.0
    %72 = vmatpush1.msra.mxu0 0.0
    %73 = vmatprep.subr.mxu0 0.0
    %74 = vmatpush1.msra.mxu0 0.0
    %75 = vmatprep.subr.mxu0 0.0
    %76 = vmatpush1.msra.mxu0 0.0
    %77 = vmatprep.subr.mxu0 0.0
    %78 = vmatpush1.msra.mxu0 0.0
    %79 = vmatprep.subr.mxu0 0.0
    %80 = vmatpush1.msra.mxu0 0.0
    %81 = vmatprep.subr.mxu0 0.0
    %82 = vmatpush1.msra.mxu0 0.0
    %83 = vmatprep.subr.mxu0 0.0
    %84 = vmatpush1.msra.mxu0 %v51
    %85 = vmatprep.subr.mxu0 0.0
    %86 = vmatpush2.msra.mxu0 0.0
    %87 = vmatprep.subr.mxu0 0.0
    %88 = vmatpush2.msra.mxu0 0.0
    %89 = vmatprep.subr.mxu0 0.0
    %90 = vmatpush2.msra.mxu0 0.0
    %91 = vmatprep.subr.mxu0 0.0
    %92 = vmatpush2.msra.mxu0 0.0
    %93 = vmatprep.subr.mxu0 0.0
    %94 = vmatpush2.msra.mxu0 0.0
    %95 = vmatprep.subr.mxu0 0.0
    %96 = vmatpush2.msra.mxu0 0.0
    %97 = vmatprep.subr.mxu0 0.0
    %98 = vmatpush2.msra.mxu0 0.0
    %99 = vmatprep.subr.mxu0 0.0
    %100 = vmatpush2.msra.mxu0 0.0
    %101 = vmatprep.subr.mxu0 0.0
    %102 = vmatpush2.msra.mxu0 0.0
    %103 = vmatprep.subr.mxu0 0.0
    %104 = vmatpush2.msra.mxu0 0.0
    %105 = vmatprep.subr.mxu0 0.0
    %106 = vmatpush2.msra.mxu0 0.0
    %107 = vmatprep.subr.mxu0 0.0
    %108 = vmatpush2.msra.mxu0 0.0
    %109 = vmatprep.subr.mxu0 0.0
    %110 = vmatpush2.msra.mxu0 0.0
    %111 = vmatprep.subr.mxu0 0.0
    %112 = vmatpush2.msra.mxu0 0.0
    %113 = vmatprep.subr.mxu0 0.0
    %114 = vmatpush2.msra.mxu0 0.0
    %115 = vmatprep.subr.mxu0 0.0
    %116 = vmatpush2.msra.mxu0 0.0
    %117 = vmatprep.mubr.f32.mxu0 0.0
    %118 = vmatmul.mubr.f32.gmra.mxu0 %v44
    %v119 = vpop.f32.mrf.mxu0
    %v120 = vadd.f32 %v35, %v119
    %v121 = vpop.f32.mrf.mxu0
    %122 = vmatprep.mubr.f32.mxu0 0.0
    %123 = vmatmul.mubr.f32.gmra.mxu0 %v47
    %v124 = vpop.f32.mrf.mxu0
    %v125 = vadd.f32 %v40, %v124
    %v126 = vpop.f32.mrf.mxu0
    %127 = vdwg.mxu0
    %v128 = vmax.f32 %v120, 0.0
    %v129 = vmax.f32 %v125, 0.0
    %v130 = vld [vmem:[%s3] sm:$0xff]
    %v131 = vld [vmem:[%s3 + $0x8] sm:$0xff]
    %v132 = vld [vmem:[%s4] sm:$0xff]
    %v133 = vld [vmem:[%s4 + $0x8] sm:$0xff]
    %135 = vset.pattern.permute.xlu0 0
    %136 = vperm.xlu0 %135, %v132
    %v137 = vpop.permute.xlu0 %136
    %140 = vset.pattern.permute.xlu0 0
    %141 = vperm.xlu0 %140, %v133
    %v142 = vpop.permute.xlu0 %141
    %vm144 = vcmask 130048
    %v146 = vsel %vm144, %v130, 0
    %v149 = vsel %vm144, %v131, 0
    %151 = vmatprep.subr.mxu0 0.0
    %152 = vmatpush1.msra.mxu0 0.0
    %153 = vmatprep.subr.mxu0 0.0
    %154 = vmatpush1.msra.mxu0 0.0
    %155 = vmatprep.subr.mxu0 0.0
    %156 = vmatpush1.msra.mxu0 0.0
    %157 = vmatprep.subr.mxu0 0.0
    %158 = vmatpush1.msra.mxu0 0.0
    %159 = vmatprep.subr.mxu0 0.0
    %160 = vmatpush1.msra.mxu0 0.0
    %161 = vmatprep.subr.mxu0 0.0
    %162 = vmatpush1.msra.mxu0 0.0
    %163 = vmatprep.subr.mxu0 0.0
    %164 = vmatpush1.msra.mxu0 0.0
    %165 = vmatprep.subr.mxu0 0.0
    %166 = vmatpush1.msra.mxu0 0.0
    %167 = vmatprep.subr.mxu0 0.0
    %168 = vmatpush1.msra.mxu0 0.0
    %169 = vmatprep.subr.mxu0 0.0
    %170 = vmatpush1.msra.mxu0 0.0
    %171 = vmatprep.subr.mxu0 0.0
    %172 = vmatpush1.msra.mxu0 0.0
    %173 = vmatprep.subr.mxu0 0.0
    %174 = vmatpush1.msra.mxu0 0.0
    %175 = vmatprep.subr.mxu0 0.0
    %176 = vmatpush1.msra.mxu0 0.0
    %177 = vmatprep.subr.mxu0 0.0
    %178 = vmatpush1.msra.mxu0 0.0
    %179 = vmatprep.subr.mxu0 0.0
    %180 = vmatpush1.msra.mxu0 %v129
    %181 = vmatprep.subr.mxu0 0.0
    %182 = vmatpush1.msra.mxu0 %v128
    %183 = vmatprep.subr.mxu0 0.0
    %184 = vmatpush2.msra.mxu0 0.0
    %185 = vmatprep.subr.mxu0 0.0
    %186 = vmatpush2.msra.mxu0 0.0
    %187 = vmatprep.subr.mxu0 0.0
    %188 = vmatpush2.msra.mxu0 0.0
    %189 = vmatprep.subr.mxu0 0.0
    %190 = vmatpush2.msra.mxu0 0.0
    %191 = vmatprep.subr.mxu0 0.0
    %192 = vmatpush2.msra.mxu0 0.0
    %193 = vmatprep.subr.mxu0 0.0
    %194 = vmatpush2.msra.mxu0 0.0
    %195 = vmatprep.subr.mxu0 0.0
    %196 = vmatpush2.msra.mxu0 0.0
    %197 = vmatprep.subr.mxu0 0.0
    %198 = vmatpush2.msra.mxu0 0.0
    %199 = vmatprep.subr.mxu0 0.0
    %200 = vmatpush2.msra.mxu0 0.0
    %201 = vmatprep.subr.mxu0 0.0
    %202 = vmatpush2.msra.mxu0 0.0
    %203 = vmatprep.subr.mxu0 0.0
    %204 = vmatpush2.msra.mxu0 0.0
    %205 = vmatprep.subr.mxu0 0.0
    %206 = vmatpush2.msra.mxu0 0.0
    %207 = vmatprep.subr.mxu0 0.0
    %208 = vmatpush2.msra.mxu0 0.0
    %209 = vmatprep.subr.mxu0 0.0
    %210 = vmatpush2.msra.mxu0 0.0
    %211 = vmatprep.subr.mxu0 0.0
    %212 = vmatpush2.msra.mxu0 0.0
    %213 = vmatprep.subr.mxu0 0.0
    %214 = vmatpush2.msra.mxu0 0.0
    %215 = vmatprep.mubr.f32.mxu0 0.0
    %216 = vmatmul.mubr.f32.gmra.mxu0 %v146
    %v217 = vpop.f32.mrf.mxu0
    %v218 = vadd.f32 %v137, %v217
    %v219 = vpop.f32.mrf.mxu0
    %220 = vmatprep.mubr.f32.mxu0 0.0
    %221 = vmatmul.mubr.f32.gmra.mxu0 %v149
    %v222 = vpop.f32.mrf.mxu0
    %v223 = vadd.f32 %v142, %v222
    %v224 = vpop.f32.mrf.mxu0
    %225 = vdwg.mxu0
    %v226 = vmax.f32 %v218, 0.0
    %v227 = vmax.f32 %v223, 0.0
    %v228 = vld [vmem:[%s5] sm:$0x7]
    %v229 = vld [vmem:[%s6] sm:$0x7]
    %231 = vset.pattern.permute.xlu0 0
    %232 = vperm.xlu0 %231, %v229
    %v233 = vpop.permute.xlu0 %232
    %v236 = vsel %vm144, %v228, 0
    %238 = vmatprep.subr.mxu0 0.0
    %239 = vmatpush1.msra.mxu0 0.0
    %240 = vmatprep.subr.mxu0 0.0
    %241 = vmatpush1.msra.mxu0 0.0
    %242 = vmatprep.subr.mxu0 0.0
    %243 = vmatpush1.msra.mxu0 0.0
    %244 = vmatprep.subr.mxu0 0.0
    %245 = vmatpush1.msra.mxu0 0.0
    %246 = vmatprep.subr.mxu0 0.0
    %247 = vmatpush1.msra.mxu0 0.0
    %248 = vmatprep.subr.mxu0 0.0
    %249 = vmatpush1.msra.mxu0 0.0
    %250 = vmatprep.subr.mxu0 0.0
    %251 = vmatpush1.msra.mxu0 0.0
    %252 = vmatprep.subr.mxu0 0.0
    %253 = vmatpush1.msra.mxu0 0.0
    %254 = vmatprep.subr.mxu0 0.0
    %255 = vmatpush1.msra.mxu0 0.0
    %256 = vmatprep.subr.mxu0 0.0
    %257 = vmatpush1.msra.mxu0 0.0
    %258 = vmatprep.subr.mxu0 0.0
    %259 = vmatpush1.msra.mxu0 0.0
    %260 = vmatprep.subr.mxu0 0.0
    %261 = vmatpush1.msra.mxu0 0.0
    %262 = vmatprep.subr.mxu0 0.0
    %263 = vmatpush1.msra.mxu0 0.0
    %264 = vmatprep.subr.mxu0 0.0
    %265 = vmatpush1.msra.mxu0 0.0
    %266 = vmatprep.subr.mxu0 0.0
    %267 = vmatpush1.msra.mxu0 %v227
    %268 = vmatprep.subr.mxu0 0.0
    %269 = vmatpush1.msra.mxu0 %v226
    %270 = vmatprep.subr.mxu0 0.0
    %271 = vmatpush2.msra.mxu0 0.0
    %272 = vmatprep.subr.mxu0 0.0
    %273 = vmatpush2.msra.mxu0 0.0
    %274 = vmatprep.subr.mxu0 0.0
    %275 = vmatpush2.msra.mxu0 0.0
    %276 = vmatprep.subr.mxu0 0.0
    %277 = vmatpush2.msra.mxu0 0.0
    %278 = vmatprep.subr.mxu0 0.0
    %279 = vmatpush2.msra.mxu0 0.0
    %280 = vmatprep.subr.mxu0 0.0
    %281 = vmatpush2.msra.mxu0 0.0
    %282 = vmatprep.subr.mxu0 0.0
    %283 = vmatpush2.msra.mxu0 0.0
    %284 = vmatprep.subr.mxu0 0.0
    %285 = vmatpush2.msra.mxu0 0.0
    %286 = vmatprep.subr.mxu0 0.0
    %287 = vmatpush2.msra.mxu0 0.0
    %288 = vmatprep.subr.mxu0 0.0
    %289 = vmatpush2.msra.mxu0 0.0
    %290 = vmatprep.subr.mxu0 0.0
    %291 = vmatpush2.msra.mxu0 0.0
    %292 = vmatprep.subr.mxu0 0.0
    %293 = vmatpush2.msra.mxu0 0.0
    %294 = vmatprep.subr.mxu0 0.0
    %295 = vmatpush2.msra.mxu0 0.0
    %296 = vmatprep.subr.mxu0 0.0
    %297 = vmatpush2.msra.mxu0 0.0
    %298 = vmatprep.subr.mxu0 0.0
    %299 = vmatpush2.msra.mxu0 0.0
    %300 = vmatprep.subr.mxu0 0.0
    %301 = vmatpush2.msra.mxu0 0.0
    %302 = vmatprep.mubr.f32.mxu0 0.0
    %303 = vmatmul.mubr.f32.gmra.mxu0 %v236
    %v304 = vpop.f32.mrf.mxu0
    %v305 = vadd.f32 %v233, %v304
    %v306 = vpop.f32.mrf.mxu0
    %307 = vdwg.mxu0
    %308 = vst [vmem:[#allocation2] sm:$0x7] %v305
    // Predicated region
    $region30: #{tpu_custom_call.1} parent=1 // pred_check
      _
    $region31: #{tpu_custom_call.1} parent=1 // pred_check_branch
      %310 = sbr.rel (0) target = $region33
    $region32: #{tpu_custom_call.1} parent=1 // pred_region
      %s312 = ssub.s32 64, 64
      %313 = vsyncadd [#allocation3], %s312
      %s315 = sshll.u32 [#allocation2], 4
      %s316 = int_to_ptr.vmem [resolvable:$true] %s315
      %318 = dma.vmem_to_hbm [thread:$0]  %s316, 64, %s7, [#allocation3]
    $region33: #{tpu_custom_call.1} parent=1 // pred_fallthru
      _
    // Predicated region
    $region34: #{tpu_custom_call.1} parent=1 // pred_check
      _
    $region35: #{tpu_custom_call.1} parent=1 // pred_check_branch
      %320 = sbr.rel (0) target = $region37
    $region36: #{tpu_custom_call.1} parent=1 // pred_region
      %321 = dma.done [#allocation3], 64
    $region37: #{tpu_custom_call.1} parent=1 // pred_fallthru
      _
    %322 = vsyncpa [#allocation3], 1

</llo_original>
